<compile_context>
chip_gen: v7x
topology: tpu7x:2x2x1
jax: 0.10.0
libtpu: 0.0.40
codegen_flags: <defaults>
</compile_context>

<pallas_src>
import functools

import jax
import jax.numpy as jnp
from jax.experimental import pallas as pl
from jax.experimental.pallas import tpu as pltpu

FORGET_BIAS = 1.0  # LFADS GenGRUCell forget bias on the update gate


# ------------------------------------------------------------------------
# Kernels
# ------------------------------------------------------------------------
def _step_kernel(clip_val, C,
                 xh_ref, h_ref, w_big_ref, w_rhc_ref, b_gates_ref,
                 w_theta_ref, b_theta_ref,
                 h_out_ref, theta_ref):
    """Single controller-cell step. xh = [x, h] pre-concatenated host-side."""
    xh = xh_ref[...].astype(jnp.float32)
    h = h_ref[...].astype(jnp.float32)

    # One fused MXU push for r / u / candidate-x pre-activations (B, 3C).
    gates = (jnp.dot(xh, w_big_ref[...], preferred_element_type=jnp.float32)
             + b_gates_ref[...])
    r = jax.nn.sigmoid(gates[:, :C])
    u = jax.nn.sigmoid(gates[:, C:2 * C])          # forget bias baked into b_gates
    c = jnp.tanh(gates[:, 2 * C:]
                 + jnp.dot(r * h, w_rhc_ref[...],
                           preferred_element_type=jnp.float32))

    h_new = u * h + (1.0 - u) * c
    h_new = jnp.clip(h_new, -clip_val, clip_val)
    h_out_ref[...] = h_new.astype(h_out_ref.dtype)

    # Fused theta projection (mean | logvar) as a single (B, 2U) slab.
    theta_ref[...] = (jnp.dot(h_new, w_theta_ref[...],
                              preferred_element_type=jnp.float32)
                      + b_theta_ref[...]).astype(theta_ref.dtype)


def _scan_kernel(clip_val, C,
                 x_ref, h0_ref, w_x_ref, w_h_ref, w_rhc_ref, b_gates_ref,
                 w_theta_ref, b_theta_ref,
                 theta_ref, h_out_ref, h_scr):
    """One grid step = one timestep. Weights stay VMEM-resident across the grid;
    the hidden state is carried in VMEM scratch (init at t==0, flushed at T-1)."""
    t = pl.program_id(0)

    @pl.when(t == 0)
    def _():
        h_scr[...] = h0_ref[...].astype(jnp.float32)

    x = x_ref[0].astype(jnp.float32)        # (B, I)
    h = h_scr[...]                          # (B, C)

    gates = (jnp.dot(x, w_x_ref[...], preferred_element_type=jnp.float32)
             + jnp.dot(h, w_h_ref[...], preferred_element_type=jnp.float32)
             + b_gates_ref[...])
    r = jax.nn.sigmoid(gates[:, :C])
    u = jax.nn.sigmoid(gates[:, C:2 * C])
    c = jnp.tanh(gates[:, 2 * C:]
                 + jnp.dot(r * h, w_rhc_ref[...],
                           preferred_element_type=jnp.float32))

    h_new = jnp.clip(u * h + (1.0 - u) * c, -clip_val, clip_val)
    h_scr[...] = h_new

    theta_ref[0] = (jnp.dot(h_new, w_theta_ref[...],
                            preferred_element_type=jnp.float32)
                    + b_theta_ref[...]).astype(theta_ref.dtype)

    @pl.when(t == pl.num_programs(0) - 1)
    def _():
        h_out_ref[...] = h_new.astype(h_out_ref.dtype)


# ------------------------------------------------------------------------
# Wrappers
# ------------------------------------------------------------------------
def _pad_batch(n):
    return max(8, ((n + 7) // 8) * 8)


def lfads_controller_cell(x, h, params, *, clip_val=5.0):
    """One LFADS controller-cell step. Returns (u_mean, u_logvar, h_new)."""
    B, _ = x.shape
    C = h.shape[1]
    twoU = params["w_theta"].shape[1]
    U = twoU // 2

    # Pad batch to a sublane multiple (wrapper-side layout plumbing only).
    Bp = _pad_batch(B)
    if Bp != B:
        x = jnp.pad(x, ((0, Bp - B), (0, 0)))
        h = jnp.pad(h, ((0, Bp - B), (0, 0)))

    xh = jnp.concatenate([x, h], axis=1)                                   # (Bp, I+C)
    w_big = jnp.concatenate([params["w_x_big"], params["w_h_big"]], 0)     # (I+C, 3C)

    inputs = (xh, h, w_big, params["w_rh_c"], params["b_gates"],
              params["w_theta"], params["b_theta"])

    def full_spec(a):
        return pl.BlockSpec(a.shape, lambda: (0,) * a.ndim)

    out_shapes = (
        jax.ShapeDtypeStruct((Bp, C), jnp.float32),      # h_new
        jax.ShapeDtypeStruct((Bp, twoU), jnp.float32),   # theta = [mean | logvar]
    )

    kernel = functools.partial(_step_kernel, clip_val, C)

    h_new, theta = pl.pallas_call(
        kernel,
        out_shape=out_shapes,
        grid=(),
        in_specs=[full_spec(a) for a in inputs],
        out_specs=tuple(pl.BlockSpec(s.shape, lambda: (0, 0)) for s in out_shapes),
        compiler_params=pltpu.CompilerParams(vmem_limit_bytes=8 * 1024 * 1024),
    )(*inputs)

    return theta[:B, :U], theta[:B, U:], h_new[:B, :]


def lfads_controller_scan(x_seq, h0, params, *, clip_val=5.0):
    """Run the cell over a sequence with the time loop inside ONE pallas_call.

    x_seq: (T, B, I).  Returns (u_mean_seq, u_logvar_seq, h_final) where the
    first two are (T, B, U) and h_final is (B, C).
    """
    T, B, I = x_seq.shape
    C = h0.shape[1]
    twoU = params["w_theta"].shape[1]
    U = twoU // 2

    Bp = _pad_batch(B)
    if Bp != B:
        x_seq = jnp.pad(x_seq, ((0, 0), (0, Bp - B), (0, 0)))
        h0 = jnp.pad(h0, ((0, Bp - B), (0, 0)))

    w_x, w_h = params["w_x_big"], params["w_h_big"]
    inputs = (x_seq, h0, w_x, w_h, params["w_rh_c"], params["b_gates"],
              params["w_theta"], params["b_theta"])

    in_specs = [
        pl.BlockSpec((1, Bp, I), lambda t: (t, 0, 0)),          # x_t streamed
        pl.BlockSpec(h0.shape, lambda t: (0, 0)),               # h0 resident
        pl.BlockSpec(w_x.shape, lambda t: (0, 0)),              # weights resident
        pl.BlockSpec(w_h.shape, lambda t: (0, 0)),
        pl.BlockSpec(params["w_rh_c"].shape, lambda t: (0, 0)),
        pl.BlockSpec(params["b_gates"].shape, lambda t: (0, 0)),
        pl.BlockSpec(params["w_theta"].shape, lambda t: (0, 0)),
        pl.BlockSpec(params["b_theta"].shape, lambda t: (0, 0)),
    ]

    out_shapes = (
        jax.ShapeDtypeStruct((T, Bp, twoU), jnp.float32),   # theta per step
        jax.ShapeDtypeStruct((Bp, C), jnp.float32),         # final hidden state
    )
    out_specs = (
        pl.BlockSpec((1, Bp, twoU), lambda t: (t, 0, 0)),
        pl.BlockSpec((Bp, C), lambda t: (0, 0)),            # resident, written at T-1
    )

    kernel = functools.partial(_scan_kernel, clip_val, C)

    theta_seq, h_final = pl.pallas_call(
        kernel,
        out_shape=out_shapes,
        grid=(T,),
        in_specs=in_specs,
        out_specs=out_specs,
        scratch_shapes=[pltpu.VMEM((Bp, C), jnp.float32)],   # carried hidden state
        compiler_params=pltpu.CompilerParams(
            dimension_semantics=("arbitrary",),              # sequential recurrence
            vmem_limit_bytes=8 * 1024 * 1024),
    )(*inputs)

    return theta_seq[:, :B, :U], theta_seq[:, :B, U:], h_final[:B, :]


# ------------------------------------------------------------------------
# Parameters (fused layout) + pure-JAX reference
# ------------------------------------------------------------------------
def init_params(key, input_size, controller_size, u_latent_size,
                forget_bias=FORGET_BIAS):
    """Deterministic synthetic parameters, stored in the fused kernel layout."""
    ks = jax.random.split(key, 12)

    def lin(k, fan_in, shape):
        bound = 1.0 / jnp.sqrt(jnp.float32(fan_in))
        return jax.random.uniform(k, shape, jnp.float32, -bound, bound)

    I, C, U = input_size, controller_size, u_latent_size
    w_x_r = lin(ks[0], I + C, (I, C))
    w_x_u = lin(ks[1], I + C, (I, C))
    w_h_r = lin(ks[2], I + C, (C, C))
    w_h_u = lin(ks[3], I + C, (C, C))
    b_r = lin(ks[4], I + C, (1, C))
    b_u = lin(ks[5], I + C, (1, C))
    w_x_c = lin(ks[6], I, (I, C))
    w_rh_c = lin(ks[7], C, (C, C))
    b_c = lin(ks[8], C, (1, C))
    w_mean = lin(ks[9], C, (C, U))
    b_mean = lin(ks[10], C, (1, U))
    w_lv = lin(ks[9], C, (C, U)) * 0.5 + 0.01
    b_lv = lin(ks[11], C, (1, U))

    return {
        # fused gate weights: columns are [r | u | candidate-x]
        "w_x_big": jnp.concatenate([w_x_r, w_x_u, w_x_c], axis=1),              # (I, 3C)
        "w_h_big": jnp.concatenate(
            [w_h_r, w_h_u, jnp.zeros((C, C), jnp.float32)], axis=1),            # (C, 3C)
        "w_rh_c": w_rh_c,                                                       # (C, C)
        # forget bias baked into the update-gate bias (host-side, once)
        "b_gates": jnp.concatenate([b_r, b_u + forget_bias, b_c], axis=1),      # (1, 3C)
        # fused theta projection: [mean | logvar]
        "w_theta": jnp.concatenate([w_mean, w_lv], axis=1),                     # (C, 2U)
        "b_theta": jnp.concatenate([b_mean, b_lv], axis=1),                     # (1, 2U)
    }


def _reference_step(x, h, p, clip_val=5.0):
    """Pure-JAX reference of one controller-cell step (same math as the module)."""
    C = h.shape[1]
    gates = x @ p["w_x_big"] + h @ p["w_h_big"] + p["b_gates"]
    r = jax.nn.sigmoid(gates[:, :C])
    u = jax.nn.sigmoid(gates[:, C:2 * C])
    c = jnp.tanh(gates[:, 2 * C:] + (r * h) @ p["w_rh_c"])
    h_new = jnp.clip(u * h + (1.0 - u) * c, -clip_val, clip_val)
    theta = h_new @ p["w_theta"] + p["b_theta"]
    U = theta.shape[1] // 2
    return theta[:, :U], theta[:, U:], h_new


# ------------------------------------------------------------------------
# Smoke test
# ------------------------------------------------------------------------
if __name__ == "__main__":
    input_size, controller_size, u_latent_size = 16, 32, 8
    batch, seq_len = 4, 6

    key = jax.random.PRNGKey(0)
    kx, kh, kp, ks = jax.random.split(key, 4)
    x = jax.random.normal(kx, (batch, input_size), jnp.float32)
    h = jax.random.normal(kh, (batch, controller_size), jnp.float32)
    x_seq = jax.random.normal(ks, (seq_len, batch, input_size), jnp.float32)
    params = init_params(kp, input_size, controller_size, u_latent_size)

    # --- single step (matches the module forward) ---
    u_mean, u_logvar, h_new = lfads_controller_cell(x, h, params, clip_val=5.0)
    jax.block_until_ready((u_mean, u_logvar, h_new))

    rm, rlv, rh = _reference_step(x, h, params)
    assert jnp.allclose(u_mean, rm, atol=5e-4), "u_mean mismatch"
    assert jnp.allclose(u_logvar, rlv, atol=5e-4), "u_logvar mismatch"
    assert jnp.allclose(h_new, rh, atol=5e-4), "controller_state mismatch"

    # --- full recurrence in one pallas_call (time loop inside the kernel) ---
    um_seq, ulv_seq, h_fin = lfads_controller_scan(x_seq, h, params, clip_val=5.0)
    jax.block_until_ready((um_seq, ulv_seq, h_fin))

    h_ref = h
    for t in range(seq_len):
        m_t, lv_t, h_ref = _reference_step(x_seq[t], h_ref, params)
        assert jnp.allclose(um_seq[t], m_t, atol=5e-4), f"scan u_mean mismatch t={t}"
        assert jnp.allclose(ulv_seq[t], lv_t, atol=5e-4), f"scan u_logvar mismatch t={t}"
    assert jnp.allclose(h_fin, h_ref, atol=5e-4), "scan final state mismatch"

    print("KERNEL_OK")
</pallas_src>

<mosaic_0001>
module attributes {stable_mosaic.version = 11 : i64} {
  func.func @_step_kernel(%arg0: memref<8x48xf32, #tpu.memory_space<vmem>>, %arg1: memref<8x32xf32, #tpu.memory_space<vmem>>, %arg2: memref<48x96xf32, #tpu.memory_space<vmem>>, %arg3: memref<32x32xf32, #tpu.memory_space<vmem>>, %arg4: memref<1x96xf32, #tpu.memory_space<vmem>>, %arg5: memref<32x16xf32, #tpu.memory_space<vmem>>, %arg6: memref<1x16xf32, #tpu.memory_space<vmem>>, %arg7: memref<8x32xf32, #tpu.memory_space<vmem>>, %arg8: memref<8x16xf32, #tpu.memory_space<vmem>>) attributes {dimension_semantics = [], scalar_prefetch = 0 : i64, scratch_operands = 0 : i64, tpu.core_type = #tpu.core_type<tc>} {
    %c0 = arith.constant 0 : index
    %c0_0 = arith.constant 0 : index
    %0 = vector.load %arg0[%c0, %c0_0] : memref<8x48xf32, #tpu.memory_space<vmem>>, vector<8x48xf32>
    %c0_1 = arith.constant 0 : index
    %c0_2 = arith.constant 0 : index
    %1 = vector.load %arg1[%c0_1, %c0_2] : memref<8x32xf32, #tpu.memory_space<vmem>>, vector<8x32xf32>
    %c0_3 = arith.constant 0 : index
    %c0_4 = arith.constant 0 : index
    %2 = vector.load %arg2[%c0_3, %c0_4] : memref<48x96xf32, #tpu.memory_space<vmem>>, vector<48x96xf32>
    %cst = arith.constant dense<0.000000e+00> : vector<8x96xf32>
    %3 = tpu.matmul %0, %2, %cst {dimension_numbers = #tpu.dot_dimension_numbers<[1], [0], [0], [1], [0, 0, 1, 1], [], []>} : vector<8x48xf32>, vector<48x96xf32>, vector<8x96xf32> -> vector<8x96xf32>
    %c0_5 = arith.constant 0 : index
    %c0_6 = arith.constant 0 : index
    %4 = vector.load %arg4[%c0_5, %c0_6] : memref<1x96xf32, #tpu.memory_space<vmem>>, vector<1x96xf32>
    %5 = vector.broadcast %4 : vector<1x96xf32> to vector<8x96xf32>
    %6 = arith.addf %3, %5 : vector<8x96xf32>
    %7 = vector.extract_strided_slice %6 {offsets = [0, 0], sizes = [8, 32], strides = [1, 1]} : vector<8x96xf32> to vector<8x32xf32>
    %8 = arith.negf %7 : vector<8x32xf32>
    %9 = math.exp %8 : vector<8x32xf32>
    %cst_7 = arith.constant 1.000000e+00 : f32
    %10 = vector.broadcast %cst_7 : f32 to vector<8x32xf32>
    %11 = arith.addf %10, %9 : vector<8x32xf32>
    %12 = arith.divf %10, %11 : vector<8x32xf32>
    %13 = vector.extract_strided_slice %6 {offsets = [0, 32], sizes = [8, 32], strides = [1, 1]} : vector<8x96xf32> to vector<8x32xf32>
    %14 = arith.negf %13 : vector<8x32xf32>
    %15 = math.exp %14 : vector<8x32xf32>
    %cst_8 = arith.constant 1.000000e+00 : f32
    %16 = vector.broadcast %cst_8 : f32 to vector<8x32xf32>
    %17 = arith.addf %16, %15 : vector<8x32xf32>
    %18 = arith.divf %16, %17 : vector<8x32xf32>
    %19 = vector.extract_strided_slice %6 {offsets = [0, 64], sizes = [8, 32], strides = [1, 1]} : vector<8x96xf32> to vector<8x32xf32>
    %20 = arith.mulf %12, %1 : vector<8x32xf32>
    %c0_9 = arith.constant 0 : index
    %c0_10 = arith.constant 0 : index
    %21 = vector.load %arg3[%c0_9, %c0_10] : memref<32x32xf32, #tpu.memory_space<vmem>>, vector<32x32xf32>
    %cst_11 = arith.constant dense<0.000000e+00> : vector<8x32xf32>
    %22 = tpu.matmul %20, %21, %cst_11 {dimension_numbers = #tpu.dot_dimension_numbers<[1], [0], [0], [1], [0, 0, 1, 1], [], []>} : vector<8x32xf32>, vector<32x32xf32>, vector<8x32xf32> -> vector<8x32xf32>
    %23 = arith.addf %19, %22 : vector<8x32xf32>
    %24 = math.tanh %23 : vector<8x32xf32>
    %25 = arith.mulf %18, %1 : vector<8x32xf32>
    %cst_12 = arith.constant 1.000000e+00 : f32
    %26 = vector.broadcast %cst_12 : f32 to vector<8x32xf32>
    %27 = arith.subf %26, %18 : vector<8x32xf32>
    %28 = arith.mulf %27, %24 : vector<8x32xf32>
    %29 = arith.addf %25, %28 : vector<8x32xf32>
    %cst_13 = arith.constant -5.000000e+00 : f32
    %cst_14 = arith.constant 5.000000e+00 : f32
    %30 = vector.broadcast %cst_13 : f32 to vector<8x32xf32>
    %31 = arith.maximumf %30, %29 : vector<8x32xf32>
    %32 = vector.broadcast %cst_14 : f32 to vector<8x32xf32>
    %33 = arith.minimumf %32, %31 : vector<8x32xf32>
    %c0_15 = arith.constant 0 : index
    %c0_16 = arith.constant 0 : index
    %34 = vector.load %arg7[%c0_15, %c0_16] : memref<8x32xf32, #tpu.memory_space<vmem>>, vector<8x32xf32>
    tpu.vector_store %arg7[%c0_15, %c0_16], %33 {strides = array<i32>} : memref<8x32xf32, #tpu.memory_space<vmem>>, vector<8x32xf32>,
    %c0_17 = arith.constant 0 : index
    %c0_18 = arith.constant 0 : index
    %35 = vector.load %arg5[%c0_17, %c0_18] : memref<32x16xf32, #tpu.memory_space<vmem>>, vector<32x16xf32>
    %cst_19 = arith.constant dense<0.000000e+00> : vector<8x16xf32>
    %36 = tpu.matmul %33, %35, %cst_19 {dimension_numbers = #tpu.dot_dimension_numbers<[1], [0], [0], [1], [0, 0, 1, 1], [], []>} : vector<8x32xf32>, vector<32x16xf32>, vector<8x16xf32> -> vector<8x16xf32>
    %c0_20 = arith.constant 0 : index
    %c0_21 = arith.constant 0 : index
    %37 = vector.load %arg6[%c0_20, %c0_21] : memref<1x16xf32, #tpu.memory_space<vmem>>, vector<1x16xf32>
    %38 = vector.broadcast %37 : vector<1x16xf32> to vector<8x16xf32>
    %39 = arith.addf %36, %38 : vector<8x16xf32>
    %c0_22 = arith.constant 0 : index
    %c0_23 = arith.constant 0 : index
    %40 = vector.load %arg8[%c0_22, %c0_23] : memref<8x16xf32, #tpu.memory_space<vmem>>, vector<8x16xf32>
    tpu.vector_store %arg8[%c0_22, %c0_23], %39 {strides = array<i32>} : memref<8x16xf32, #tpu.memory_space<vmem>>, vector<8x16xf32>,
    return
  }
}

</mosaic_0001>

<llo_original>
// kernel: tpu_custom_call.1
$region0: #{tpu_custom_call.1}
  #allocation0 [shape = 'u32[]', space=smem, size = 0x4, offset = 0x4, fixed_abs, tag = 'smem constant byte address 0x4 - core index']
  #allocation1 [shape = 'u32[144,128]{1,0:T(1,128)}', space=vmem, size = 0x12000, scoped, tag = 'internal scratch']
  %s0 = inlined_call_operand.hbm [shape: f32[8,48], index: 0, kind: input, shape index: {}]
  %s1 = inlined_call_operand.hbm [shape: f32[8,32], index: 1, kind: input, shape index: {}]
  %s2 = inlined_call_operand.vmem [shape: f32[48,96], index: 2, kind: input, shape index: {}]
  %s3 = inlined_call_operand.hbm [shape: f32[32,32], index: 3, kind: input, shape index: {}]
  %s4 = inlined_call_operand.vmem [shape: f32[1,96], index: 4, kind: input, shape index: {}]
  %s5 = inlined_call_operand.vmem [shape: f32[32,16], index: 5, kind: input, shape index: {}]
  %s6 = inlined_call_operand.vmem [shape: f32[1,16], index: 6, kind: input, shape index: {}]
  %s7 = inlined_call_operand.hbm [shape: f32[8,32], index: 7, kind: output, shape index: {0}]
  %s8 = inlined_call_operand.hbm [shape: f32[8,16], index: 8, kind: output, shape index: {1}]
  %9 = xla_tuple %s7, %s8
  %s10 = sld [smem:[#allocation0]]
  $region58: #{tpu_custom_call.1} parent=0
    _
  %s12 = ssub.s32 1, %s10
  %s13 = scalar_select 0, %s12, %s10
  $region1: #{tpu_custom_call.1} parent=0
    #allocation2 [shape = 'u8[4096]{0}', space=vmem, size = 0x1000, scoped, tag = 'input window, operand 0, single buffered']
    #allocation3 [shape = 's32[1]{0}', space=sflag, size = 0x4, scoped, tag = 'scoped memory for tpu_custom_call.1']
    #allocation4 [shape = 's32[1]{0}', space=sflag, size = 0x4, scoped, tag = 'scoped memory for tpu_custom_call.1']
    #allocation5 [shape = 'u8[4096]{0}', space=vmem, size = 0x1000, scoped, tag = 'input window, operand 1, single buffered']
    #allocation6 [shape = 's32[1]{0}', space=sflag, size = 0x4, scoped, tag = 'scoped memory for tpu_custom_call.1']
    #allocation7 [shape = 'u8[16384]{0}', space=vmem, size = 0x4000, scoped, tag = 'input window, operand 3, single buffered']
    #allocation8 [shape = 'u8[4096]{0}', space=vmem, size = 0x1000, scoped, tag = 'output window, operand 0, single buffered']
    #allocation9 [shape = 'u8[4096]{0}', space=vmem, size = 0x1000, scoped, tag = 'output window, operand 1, single buffered']
    #allocation10 [shape = 's32[1]{0}', space=sflag, size = 0x4, scoped, tag = 'scoped memory for tpu_custom_call.1']
    %14 = vsyncpa [#allocation3], 0
    %15 = vsyncpa [#allocation6], 0
    %16 = vsyncpa [#allocation4], 0
    %17 = vsyncpa [#allocation10], 0
    // Predicated region
    $region2: #{tpu_custom_call.1} parent=1 // pred_check
      _
    $region3: #{tpu_custom_call.1} parent=1 // pred_check_branch
      %19 = sbr.rel (0) target = $region5
    $region4: #{tpu_custom_call.1} parent=1 // pred_region
      %s21 = ssub.s32 128, 128
      %22 = vsyncadd [#allocation3], %s21
      %s24 = sshll.u32 [#allocation2], 4
      %s25 = int_to_ptr.vmem [resolvable:$true] %s24
      %27 = dma.hbm_to_vmem [thread:$0]  %s0, 128, %s25, [#allocation3]
    $region5: #{tpu_custom_call.1} parent=1 // pred_fallthru
      _
    // Predicated region
    $region6: #{tpu_custom_call.1} parent=1 // pred_check
      _
    $region7: #{tpu_custom_call.1} parent=1 // pred_check_branch
      %29 = sbr.rel (0) target = $region9
    $region8: #{tpu_custom_call.1} parent=1 // pred_region
      %s31 = ssub.s32 128, 128
      %32 = vsyncadd [#allocation6], %s31
      %s34 = sshll.u32 [#allocation5], 4
      %s35 = int_to_ptr.vmem [resolvable:$true] %s34
      %37 = dma.hbm_to_vmem [thread:$0]  %s1, 128, %s35, [#allocation6]
    $region9: #{tpu_custom_call.1} parent=1 // pred_fallthru
      _
    // Predicated region
    $region10: #{tpu_custom_call.1} parent=1 // pred_check
      _
    $region11: #{tpu_custom_call.1} parent=1 // pred_check_branch
      %39 = sbr.rel (0) target = $region13
    $region12: #{tpu_custom_call.1} parent=1 // pred_region
      _
    $region13: #{tpu_custom_call.1} parent=1 // pred_fallthru
      _
    // Predicated region
    $region14: #{tpu_custom_call.1} parent=1 // pred_check
      _
    $region15: #{tpu_custom_call.1} parent=1 // pred_check_branch
      %41 = sbr.rel (0) target = $region17
    $region16: #{tpu_custom_call.1} parent=1 // pred_region
      %s43 = ssub.s32 512, 512
      %44 = vsyncadd [#allocation6], %s43
      %s45 = sshll.u32 [#allocation7], 4
      %s46 = int_to_ptr.vmem [resolvable:$true] %s45
      %51 = dma.hbm_to_vmem [thread:$0]  %s3, 512, %s46, [#allocation6], 128, 128, 8
    $region17: #{tpu_custom_call.1} parent=1 // pred_fallthru
      _
    // Predicated region
    $region18: #{tpu_custom_call.1} parent=1 // pred_check
      _
    $region19: #{tpu_custom_call.1} parent=1 // pred_check_branch
      %53 = sbr.rel (0) target = $region21
    $region20: #{tpu_custom_call.1} parent=1 // pred_region
      _
    $region21: #{tpu_custom_call.1} parent=1 // pred_fallthru
      _
    // Predicated region
    $region22: #{tpu_custom_call.1} parent=1 // pred_check
      _
    $region23: #{tpu_custom_call.1} parent=1 // pred_check_branch
      %55 = sbr.rel (0) target = $region25
    $region24: #{tpu_custom_call.1} parent=1 // pred_region
      _
    $region25: #{tpu_custom_call.1} parent=1 // pred_fallthru
      _
    // Predicated region
    $region26: #{tpu_custom_call.1} parent=1 // pred_check
      _
    $region27: #{tpu_custom_call.1} parent=1 // pred_check_branch
      %57 = sbr.rel (0) target = $region29
    $region28: #{tpu_custom_call.1} parent=1 // pred_region
      _
    $region29: #{tpu_custom_call.1} parent=1 // pred_fallthru
      _
    // Predicated region
    $region30: #{tpu_custom_call.1} parent=1 // pred_check
      _
    $region31: #{tpu_custom_call.1} parent=1 // pred_check_branch
      %59 = sbr.rel (0) target = $region33
    $region32: #{tpu_custom_call.1} parent=1 // pred_region
      %60 = dma.done [#allocation3], 128
    $region33: #{tpu_custom_call.1} parent=1 // pred_fallthru
      _
    // Predicated region
    $region34: #{tpu_custom_call.1} parent=1 // pred_check
      _
    $region35: #{tpu_custom_call.1} parent=1 // pred_check_branch
      %62 = sbr.rel (0) target = $region37
    $region36: #{tpu_custom_call.1} parent=1 // pred_region
      %63 = dma.done [#allocation6], 128
    $region37: #{tpu_custom_call.1} parent=1 // pred_fallthru
      _
    // Predicated region
    $region38: #{tpu_custom_call.1} parent=1 // pred_check
      _
    $region39: #{tpu_custom_call.1} parent=1 // pred_check_branch
      %65 = sbr.rel (0) target = $region41
    $region40: #{tpu_custom_call.1} parent=1 // pred_region
      %66 = dma.done [#allocation6], 512
    $region41: #{tpu_custom_call.1} parent=1 // pred_fallthru
      _
    %v67 = vld [vmem:[#allocation2] sm:$0xff]
    %v68 = vld [vmem:[#allocation5] sm:$0xff]
    %v69 = vld [vmem:[%s2] sm:$0xff]
    %v70 = vld [vmem:[%s2 + $0x8] sm:$0xff]
    %v71 = vld [vmem:[%s2 + $0x10] sm:$0xff]
    %v72 = vld [vmem:[%s2 + $0x18] sm:$0xff]
    %v73 = vld [vmem:[%s2 + $0x20] sm:$0xff]
    %v74 = vld [vmem:[%s2 + $0x28] sm:$0xff]
    %v75 = vld [vmem:[%s4] sm:$0x1]
    %v77 = vlaneseq
    %v78 = vshrl.u32 %v77, 7
    %v79 = vsub.s32 0, %v78
    %v80 = vrot.slane %v75, %v79
    %vm82 = vcmask 392192
    %v84 = vsel %vm82, %v67, 0
    %86 = vmatprep.subr.mxu0 0.0
    %87 = vmatpush1.msra.mxu0 %v69
    %88 = vmatprep.subr.mxu0 0.0
    %89 = vmatpush1.msra.mxu0 %v70
    %90 = vmatprep.subr.mxu0 0.0
    %91 = vmatpush1.msra.mxu0 %v71
    %92 = vmatprep.subr.mxu0 0.0
    %93 = vmatpush1.msra.mxu0 %v72
    %94 = vmatprep.subr.mxu0 0.0
    %95 = vmatpush1.msra.mxu0 %v73
    %96 = vmatprep.subr.mxu0 0.0
    %97 = vmatpush1.msra.mxu0 %v74
    %98 = vmatprep.subr.mxu0 0.0
    %99 = vmatpush1.msra.mxu0 0.0
    %100 = vmatprep.subr.mxu0 0.0
    %101 = vmatpush1.msra.mxu0 0.0
    %102 = vmatprep.subr.mxu0 0.0
    %103 = vmatpush1.msra.mxu0 0.0
    %104 = vmatprep.subr.mxu0 0.0
    %105 = vmatpush1.msra.mxu0 0.0
    %106 = vmatprep.subr.mxu0 0.0
    %107 = vmatpush1.msra.mxu0 0.0
    %108 = vmatprep.subr.mxu0 0.0
    %109 = vmatpush1.msra.mxu0 0.0
    %110 = vmatprep.subr.mxu0 0.0
    %111 = vmatpush1.msra.mxu0 0.0
    %112 = vmatprep.subr.mxu0 0.0
    %113 = vmatpush1.msra.mxu0 0.0
    %114 = vmatprep.subr.mxu0 0.0
    %115 = vmatpush1.msra.mxu0 0.0
    %116 = vmatprep.subr.mxu0 0.0
    %117 = vmatpush1.msra.mxu0 0.0
    %118 = vmatprep.subr.mxu0 0.0
    %119 = vmatpush1.msra.mxu0 0.0
    %120 = vmatprep.subr.mxu0 0.0
    %121 = vmatpush1.msra.mxu0 0.0
    %122 = vmatprep.subr.mxu0 0.0
    %123 = vmatpush1.msra.mxu0 0.0
    %124 = vmatprep.subr.mxu0 0.0
    %125 = vmatpush1.msra.mxu0 0.0
    %126 = vmatprep.subr.mxu0 0.0
    %127 = vmatpush1.msra.mxu0 0.0
    %128 = vmatprep.subr.mxu0 0.0
    %129 = vmatpush1.msra.mxu0 0.0
    %130 = vmatprep.subr.mxu0 0.0
    %131 = vmatpush1.msra.mxu0 0.0
    %132 = vmatprep.subr.mxu0 0.0
    %133 = vmatpush1.msra.mxu0 0.0
    %134 = vmatprep.subr.mxu0 0.0
    %135 = vmatpush1.msra.mxu0 0.0
    %136 = vmatprep.subr.mxu0 0.0
    %137 = vmatpush1.msra.mxu0 0.0
    %138 = vmatprep.subr.mxu0 0.0
    %139 = vmatpush1.msra.mxu0 0.0
    %140 = vmatprep.subr.mxu0 0.0
    %141 = vmatpush1.msra.mxu0 0.0
    %142 = vmatprep.subr.mxu0 0.0
    %143 = vmatpush1.msra.mxu0 0.0
    %144 = vmatprep.subr.mxu0 0.0
    %145 = vmatpush1.msra.mxu0 0.0
    %146 = vmatprep.subr.mxu0 0.0
    %147 = vmatpush1.msra.mxu0 0.0
    %148 = vmatprep.subr.mxu0 0.0
    %149 = vmatpush1.msra.mxu0 0.0
    %150 = vmatprep.mubr.f32.mxu0 0.0
    %151 = vmatmul.mubr.f32.gmra.mrb[0].mxu0 %v84
    %v152 = vpop.f32.mrb[0].mxu0
    %v153 = vadd.f32 %v80, %v152
    %v154 = vpop.f32.mrb[0].mxu0
    %155 = vdwg.mxu0
    %v156 = vxor.u32 %v153, 2147483648
    %v157 = vmul.f32 %v156, 1.442695
    %v158 = vpow.pop %v157
    %v159 = vadd.f32 %v158, 1.0
    %v160 = vrcp.pop %v159
    %v161 = vmul.f32 1.0, %v160
    %v162 = vmul.f32 %v161, %v68
    %v163 = vld [vmem:[#allocation7] sm:$0xff]
    %v164 = vld [vmem:[#allocation7 + $0x8] sm:$0xff]
    %v165 = vld [vmem:[#allocation7 + $0x10] sm:$0xff]
    %v166 = vld [vmem:[#allocation7 + $0x18] sm:$0xff]
    %vm167 = vcmask 261120
    %v169 = vsel %vm167, %v162, 0
    %171 = vmatprep.subr.mxu0 0.0
    %172 = vmatpush1.msra.mxu0 %v163
    %173 = vmatprep.subr.mxu0 0.0
    %174 = vmatpush1.msra.mxu0 %v164
    %175 = vmatprep.subr.mxu0 0.0
    %176 = vmatpush1.msra.mxu0 %v165
    %177 = vmatprep.subr.mxu0 0.0
    %178 = vmatpush1.msra.mxu0 %v166
    %179 = vmatprep.subr.mxu0 0.0
    %180 = vmatpush1.msra.mxu0 0.0
    %181 = vmatprep.subr.mxu0 0.0
    %182 = vmatpush1.msra.mxu0 0.0
    %183 = vmatprep.subr.mxu0 0.0
    %184 = vmatpush1.msra.mxu0 0.0
    %185 = vmatprep.subr.mxu0 0.0
    %186 = vmatpush1.msra.mxu0 0.0
    %187 = vmatprep.subr.mxu0 0.0
    %188 = vmatpush1.msra.mxu0 0.0
    %189 = vmatprep.subr.mxu0 0.0
    %190 = vmatpush1.msra.mxu0 0.0
    %191 = vmatprep.subr.mxu0 0.0
    %192 = vmatpush1.msra.mxu0 0.0
    %193 = vmatprep.subr.mxu0 0.0
    %194 = vmatpush1.msra.mxu0 0.0
    %195 = vmatprep.subr.mxu0 0.0
    %196 = vmatpush1.msra.mxu0 0.0
    %197 = vmatprep.subr.mxu0 0.0
    %198 = vmatpush1.msra.mxu0 0.0
    %199 = vmatprep.subr.mxu0 0.0
    %200 = vmatpush1.msra.mxu0 0.0
    %201 = vmatprep.subr.mxu0 0.0
    %202 = vmatpush1.msra.mxu0 0.0
    %203 = vmatprep.subr.mxu0 0.0
    %204 = vmatpush1.msra.mxu0 0.0
    %205 = vmatprep.subr.mxu0 0.0
    %206 = vmatpush1.msra.mxu0 0.0
    %207 = vmatprep.subr.mxu0 0.0
    %208 = vmatpush1.msra.mxu0 0.0
    %209 = vmatprep.subr.mxu0 0.0
    %210 = vmatpush1.msra.mxu0 0.0
    %211 = vmatprep.subr.mxu0 0.0
    %212 = vmatpush1.msra.mxu0 0.0
    %213 = vmatprep.subr.mxu0 0.0
    %214 = vmatpush1.msra.mxu0 0.0
    %215 = vmatprep.subr.mxu0 0.0
    %216 = vmatpush1.msra.mxu0 0.0
    %217 = vmatprep.subr.mxu0 0.0
    %218 = vmatpush1.msra.mxu0 0.0
    %219 = vmatprep.subr.mxu0 0.0
    %220 = vmatpush1.msra.mxu0 0.0
    %221 = vmatprep.subr.mxu0 0.0
    %222 = vmatpush1.msra.mxu0 0.0
    %223 = vmatprep.subr.mxu0 0.0
    %224 = vmatpush1.msra.mxu0 0.0
    %225 = vmatprep.subr.mxu0 0.0
    %226 = vmatpush1.msra.mxu0 0.0
    %227 = vmatprep.subr.mxu0 0.0
    %228 = vmatpush1.msra.mxu0 0.0
    %229 = vmatprep.subr.mxu0 0.0
    %230 = vmatpush1.msra.mxu0 0.0
    %231 = vmatprep.subr.mxu0 0.0
    %232 = vmatpush1.msra.mxu0 0.0
    %233 = vmatprep.subr.mxu0 0.0
    %234 = vmatpush1.msra.mxu0 0.0
    %235 = vmatprep.mubr.f32.mxu0 0.0
    %236 = vmatmul.mubr.f32.gmra.mrb[0].mxu0 %v169
    %v237 = vpop.f32.mrb[0].mxu0
    %v238 = vadd.f32 0.0, %v237
    %v239 = vpop.f32.mrb[0].mxu0
    %240 = vdwg.mxu0
    %242 = vrot.lane.b32.xlu0 %v238, 64
    %v243 = vpop.permute.xlu0 %242
    %v245 = vadd.f32 %v153, %v243
    %v246 = vtanh.pop %v245
    %248 = vrot.lane.b32.xlu0 %v68, 32
    %v249 = vpop.permute.xlu0 %248
    %v251 = vmul.f32 %v161, %v249
    %v252 = vsub.f32 1.0, %v161
    %254 = vrot.lane.b32.xlu0 %v246, 96
    %v255 = vpop.permute.xlu0 %254
    %v257 = vmul.f32 %v252, %v255
    %v258 = vadd.f32 %v251, %v257
    %v259 = vmax.f32 %v258, -5.0
    %v260 = vmin.f32 %v259, 5.0
    %262 = vrot.lane.b32.xlu0 %v260, 96
    %v263 = vpop.permute.xlu0 %262
    %265 = vst.msk [vmem:[#allocation8] sm:$0xff] %vm167, %v263
    %v266 = vld [vmem:[%s5] sm:$0xff]
    %v267 = vld [vmem:[%s5 + $0x8] sm:$0xff]
    %v268 = vld [vmem:[%s5 + $0x10] sm:$0xff]
    %v269 = vld [vmem:[%s5 + $0x18] sm:$0xff]
    %v270 = vld [vmem:[%s6] sm:$0x1]
    %v272 = vlaneseq
    %v273 = vshrl.u32 %v272, 7
    %v274 = vsub.s32 0, %v273
    %v275 = vrot.slane %v270, %v274
    %v277 = vsel %vm167, %v263, 0
    %279 = vmatprep.subr.mxu0 0.0
    %280 = vmatpush1.msra.mxu0 %v266
    %281 = vmatprep.subr.mxu0 0.0
    %282 = vmatpush1.msra.mxu0 %v267
    %283 = vmatprep.subr.mxu0 0.0
    %284 = vmatpush1.msra.mxu0 %v268
    %285 = vmatprep.subr.mxu0 0.0
    %286 = vmatpush1.msra.mxu0 %v269
    %287 = vmatprep.subr.mxu0 0.0
    %288 = vmatpush1.msra.mxu0 0.0
    %289 = vmatprep.subr.mxu0 0.0
    %290 = vmatpush1.msra.mxu0 0.0
    %291 = vmatprep.subr.mxu0 0.0
    %292 = vmatpush1.msra.mxu0 0.0
    %293 = vmatprep.subr.mxu0 0.0
    %294 = vmatpush1.msra.mxu0 0.0
    %295 = vmatprep.subr.mxu0 0.0
    %296 = vmatpush1.msra.mxu0 0.0
    %297 = vmatprep.subr.mxu0 0.0
    %298 = vmatpush1.msra.mxu0 0.0
    %299 = vmatprep.subr.mxu0 0.0
    %300 = vmatpush1.msra.mxu0 0.0
    %301 = vmatprep.subr.mxu0 0.0
    %302 = vmatpush1.msra.mxu0 0.0
    %303 = vmatprep.subr.mxu0 0.0
    %304 = vmatpush1.msra.mxu0 0.0
    %305 = vmatprep.subr.mxu0 0.0
    %306 = vmatpush1.msra.mxu0 0.0
    %307 = vmatprep.subr.mxu0 0.0
    %308 = vmatpush1.msra.mxu0 0.0
    %309 = vmatprep.subr.mxu0 0.0
    %310 = vmatpush1.msra.mxu0 0.0
    %311 = vmatprep.subr.mxu0 0.0
    %312 = vmatpush1.msra.mxu0 0.0
    %313 = vmatprep.subr.mxu0 0.0
    %314 = vmatpush1.msra.mxu0 0.0
    %315 = vmatprep.subr.mxu0 0.0
    %316 = vmatpush1.msra.mxu0 0.0
    %317 = vmatprep.subr.mxu0 0.0
    %318 = vmatpush1.msra.mxu0 0.0
    %319 = vmatprep.subr.mxu0 0.0
    %320 = vmatpush1.msra.mxu0 0.0
    %321 = vmatprep.subr.mxu0 0.0
    %322 = vmatpush1.msra.mxu0 0.0
    %323 = vmatprep.subr.mxu0 0.0
    %324 = vmatpush1.msra.mxu0 0.0
    %325 = vmatprep.subr.mxu0 0.0
    %326 = vmatpush1.msra.mxu0 0.0
    %327 = vmatprep.subr.mxu0 0.0
    %328 = vmatpush1.msra.mxu0 0.0
    %329 = vmatprep.subr.mxu0 0.0
    %330 = vmatpush1.msra.mxu0 0.0
    %331 = vmatprep.subr.mxu0 0.0
    %332 = vmatpush1.msra.mxu0 0.0
    %333 = vmatprep.subr.mxu0 0.0
    %334 = vmatpush1.msra.mxu0 0.0
    %335 = vmatprep.subr.mxu0 0.0
    %336 = vmatpush1.msra.mxu0 0.0
    %337 = vmatprep.subr.mxu0 0.0
    %338 = vmatpush1.msra.mxu0 0.0
    %339 = vmatprep.subr.mxu0 0.0
    %340 = vmatpush1.msra.mxu0 0.0
    %341 = vmatprep.subr.mxu0 0.0
    %342 = vmatpush1.msra.mxu0 0.0
    %343 = vmatprep.mubr.f32.mxu0 0.0
    %344 = vmatmul.mubr.f32.gmra.mrb[0].mxu0 %v277
    %v345 = vpop.f32.mrb[0].mxu0
    %v346 = vadd.f32 %v275, %v345
    %v347 = vpop.f32.mrb[0].mxu0
    %348 = vdwg.mxu0
    %vm349 = vcmask 130048
    %350 = vst.msk [vmem:[#allocation9] sm:$0xff] %vm349, %v346
    // Predicated region
    $region42: #{tpu_custom_call.1} parent=1 // pred_check
      _
    $region43: #{tpu_custom_call.1} parent=1 // pred_check_branch
      %352 = sbr.rel (0) target = $region45
    $region44: #{tpu_custom_call.1} parent=1 // pred_region
      %s354 = ssub.s32 128, 128
      %355 = vsyncadd [#allocation4], %s354
      %s357 = sshll.u32 [#allocation8], 4
      %s358 = int_to_ptr.vmem [resolvable:$true] %s357
      %360 = dma.vmem_to_hbm [thread:$0]  %s358, 128, %s7, [#allocation4]
    $region45: #{tpu_custom_call.1} parent=1 // pred_fallthru
      _
    // Predicated region
    $region46: #{tpu_custom_call.1} parent=1 // pred_check
      _
    $region47: #{tpu_custom_call.1} parent=1 // pred_check_branch
      %362 = sbr.rel (0) target = $region49
    $region48: #{tpu_custom_call.1} parent=1 // pred_region
      %s364 = ssub.s32 128, 128
      %365 = vsyncadd [#allocation10], %s364
      %s367 = sshll.u32 [#allocation9], 4
      %s368 = int_to_ptr.vmem [resolvable:$true] %s367
      %370 = dma.vmem_to_hbm [thread:$0]  %s368, 128, %s8, [#allocation10]
    $region49: #{tpu_custom_call.1} parent=1 // pred_fallthru
      _
    // Predicated region
    $region50: #{tpu_custom_call.1} parent=1 // pred_check
      _
    $region51: #{tpu_custom_call.1} parent=1 // pred_check_branch
      %372 = sbr.rel (0) target = $region53
    $region52: #{tpu_custom_call.1} parent=1 // pred_region
      %373 = dma.done [#allocation4], 128
    $region53: #{tpu_custom_call.1} parent=1 // pred_fallthru
      _
    // Predicated region
    $region54: #{tpu_custom_call.1} parent=1 // pred_check
      _
    $region55: #{tpu_custom_call.1} parent=1 // pred_check_branch
      %375 = sbr.rel (0) target = $region57
    $region56: #{tpu_custom_call.1} parent=1 // pred_region
      %376 = dma.done [#allocation10], 128
    $region57: #{tpu_custom_call.1} parent=1 // pred_fallthru
      _
    %377 = vsyncpa [#allocation3], 1
    %378 = vsyncpa [#allocation6], 1
    %379 = vsyncpa [#allocation4], 1
    %380 = vsyncpa [#allocation10], 1

</llo_original>
